<compile_context>
chip_gen: v7x
topology: tpu7x:2x2x1
jax: 0.10.0
libtpu: 0.0.40
codegen_flags: <defaults>
</compile_context>

<pallas_src>
import jax
import jax.numpy as jnp
from jax.experimental import pallas as pl
from jax.experimental.pallas import tpu as pltpu


def _round_up(x, m):
    return ((x + m - 1) // m) * m


def _make_kernel(n_total):
    def kernel(logits_ref, t_ref, labels_ref, out_ref, acc_ref):
        i = pl.program_id(0)
        tile_n, c = logits_ref.shape

        @pl.when(i == 0)
        def _init():
            acc_ref[...] = jnp.zeros_like(acc_ref)

        x = logits_ref[...].astype(jnp.float32)                  # (tile_n, C)

        # softmax over the class dim (dim=1 in the PyTorch module)
        m = jnp.max(x, axis=-1, keepdims=True)
        e = jnp.exp(x - m)
        p = e * pl.reciprocal(jnp.sum(e, axis=-1, keepdims=True), approx=True)

        # corrected probabilities: p @ T on the MXU (f32 accumulate)
        corr = jnp.dot(p, t_ref[...], preferred_element_type=jnp.float32)

        # Label gather FIRST (one-hot mask on corr), then clamp + log on the
        # (tile_n, 1) column only.  clamp-then-log commutes with the pick.
        labels = labels_ref[...]                                 # (tile_n, 1) i32
        cls_idx = jax.lax.broadcasted_iota(jnp.int32, (tile_n, c), 1)
        picked = jnp.sum(jnp.where(cls_idx == labels, corr, 0.0),
                         axis=-1, keepdims=True)                 # corr[i, labels[i]]
        logp = jnp.log(jnp.maximum(picked, 1e-7))                # only tile_n logs

        # Mask out padded rows (global row index >= true batch size).
        row = i * tile_n + jax.lax.broadcasted_iota(jnp.int32, (tile_n, 1), 0)
        contrib = jnp.where(row < n_total, logp, 0.0)

        acc_ref[...] += jnp.sum(contrib, axis=0, keepdims=True)  # (1, 1)
        # Negative *sum* of picked log-probs; the wrapper applies the reduction.
        out_ref[...] = -acc_ref[...]

    return kernel


def forward_correction_loss(logits, T, labels, reduction="mean", tile_n=None):
    """logits: (N, C) f32, T: (C, C) f32, labels: (N,) int -> scalar f32."""
    n, c = logits.shape
    if tile_n is None:
        tile_n = min(512, _round_up(n, 8))
    tile_n = _round_up(tile_n, 8)
    n_pad = _round_up(n, tile_n)
    num_tiles = n_pad // tile_n

    logits_p = jnp.pad(logits.astype(jnp.float32), ((0, n_pad - n), (0, 0)))
    labels_p = jnp.pad(labels.astype(jnp.int32), (0, n_pad - n)).reshape(n_pad, 1)
    t_f32 = T.astype(jnp.float32)

    # VMEM budget: double-buffered logits/labels tiles + resident T + headroom.
    vmem_bytes = 4 * (2 * tile_n * c + c * c + 6 * tile_n * c + 2 * tile_n)
    vmem_limit = int(min(64 * 1024 * 1024,
                         max(vmem_bytes + (1 << 20), 4 * 1024 * 1024)))

    out = pl.pallas_call(
        _make_kernel(n),
        out_shape=jax.ShapeDtypeStruct((1, 1), jnp.float32),
        grid=(num_tiles,),
        in_specs=[
            pl.BlockSpec((tile_n, c), lambda i: (i, 0)),   # logits tiles (pipelined)
            pl.BlockSpec((c, c), lambda i: (0, 0)),        # T stays resident
            pl.BlockSpec((tile_n, 1), lambda i: (i, 0)),   # labels tiles
        ],
        out_specs=pl.BlockSpec((1, 1), lambda i: (0, 0)),
        scratch_shapes=[pltpu.VMEM((1, 1), jnp.float32)],
        compiler_params=pltpu.CompilerParams(
            dimension_semantics=("arbitrary",),            # serial reduction over tiles
            vmem_limit_bytes=vmem_limit,
        ),
    )(logits_p, t_f32, labels_p)

    neg_sum = out[0, 0]
    if reduction == "mean":
        return neg_sum / jnp.float32(n)
    if reduction == "sum":
        return neg_sum
    # TODO(synk): reduction='none' (per-sample loss vector) not implemented in the kernel.
    raise NotImplementedError(f"reduction={reduction!r}")


def _reference(logits, T, labels):
    p = jax.nn.softmax(logits, axis=1)
    corr = jnp.maximum(p @ T, 1e-7)
    log_p = jnp.log(corr)
    return -jnp.mean(log_p[jnp.arange(logits.shape[0]), labels])


if __name__ == "__main__":
    key = jax.random.PRNGKey(0)
    k1, k2 = jax.random.split(key)

    # Small but non-trivial: N not a multiple of the tile -> exercises the
    # padded-row masking and multi-tile accumulation (tile_n=8 -> 3 grid steps).
    N, C = 19, 16
    logits = jax.random.normal(k1, (N, C), dtype=jnp.float32)
    labels = jax.random.randint(k2, (N,), 0, C, dtype=jnp.int32)

    # Deterministic row-stochastic noise-transition matrix (synthetic):
    eps = 0.2
    T = (1.0 - eps) * jnp.eye(C, dtype=jnp.float32) + (eps / C) * jnp.ones(
        (C, C), dtype=jnp.float32
    )

    loss = forward_correction_loss(logits, T, labels, tile_n=8)
    jax.block_until_ready(loss)

    ref = _reference(logits, T, labels)
    assert jnp.allclose(loss, ref, atol=2e-3, rtol=2e-3), (loss, ref)

    print("KERNEL_OK")
</pallas_src>

<mosaic_0001>
module attributes {stable_mosaic.version = 11 : i64} {
  func.func @kernel(%arg0: i32, %arg1: memref<8x16xf32, #tpu.memory_space<vmem>>, %arg2: memref<16x16xf32, #tpu.memory_space<vmem>>, %arg3: memref<8x1xi32, #tpu.memory_space<vmem>>, %arg4: memref<1x1xf32, #tpu.memory_space<vmem>>, %arg5: memref<1x1xf32, #tpu.memory_space<vmem>>) attributes {dimension_semantics = [#tpu.dimension_semantics<arbitrary>], iteration_bounds = array<i64: 3>, scalar_prefetch = 0 : i64, scratch_operands = 1 : i64, tpu.core_type = #tpu.core_type<tc>, window_params = [{transform_indices = @transform_0, window_bounds = array<i64: 8, 16>}, {pipeline_mode = #tpu.pipeline_mode<synchronous>, transform_indices = @transform_1, window_bounds = array<i64: 16, 16>}, {transform_indices = @transform_2, window_bounds = array<i64: 8, 1>}, {pipeline_mode = #tpu.pipeline_mode<synchronous>, transform_indices = @transform_3, window_bounds = array<i64: 1, 1>}]} {
    %c0_i32 = arith.constant 0 : i32
    %0 = arith.cmpi eq, %arg0, %c0_i32 : i32
    %1 = arith.extui %0 : i1 to i32
    %c0_i32_0 = arith.constant 0 : i32
    %2 = arith.cmpi ne, %1, %c0_i32_0 : i32
    scf.if %2 {
      %cst_22 = arith.constant 0.000000e+00 : f32
      %44 = vector.broadcast %cst_22 : f32 to vector<1x1xf32>
      %c0_23 = arith.constant 0 : index
      %c0_24 = arith.constant 0 : index
      %45 = vector.load %arg5[%c0_23, %c0_24] : memref<1x1xf32, #tpu.memory_space<vmem>>, vector<1x1xf32>
      tpu.vector_store %arg5[%c0_23, %c0_24], %44 {strides = array<i32>} : memref<1x1xf32, #tpu.memory_space<vmem>>, vector<1x1xf32>,
    } else {
    }
    %c0 = arith.constant 0 : index
    %c0_1 = arith.constant 0 : index
    %3 = vector.load %arg1[%c0, %c0_1] : memref<8x16xf32, #tpu.memory_space<vmem>>, vector<8x16xf32>
    %cst = arith.constant dense<0xFF800000> : vector<8xf32>
    %4 = vector.multi_reduction <maximumf>, %3, %cst [1] : vector<8x16xf32> to vector<8xf32>
    %5 = vector.shape_cast %4 : vector<8xf32> to vector<8x1xf32>
    %6 = vector.broadcast %5 : vector<8x1xf32> to vector<8x16xf32>
    %7 = arith.subf %3, %6 : vector<8x16xf32>
    %8 = math.exp %7 : vector<8x16xf32>
    %cst_2 = arith.constant dense<0.000000e+00> : vector<8xf32>
    %9 = vector.multi_reduction <add>, %8, %cst_2 [1] : vector<8x16xf32> to vector<8xf32>
    %10 = vector.shape_cast %9 : vector<8xf32> to vector<8x1xf32>
    %11 = tpu.reciprocal %10 {approx = true} : vector<8x1xf32> -> vector<8x1xf32>
    %12 = vector.broadcast %11 : vector<8x1xf32> to vector<8x16xf32>
    %13 = arith.mulf %8, %12 : vector<8x16xf32>
    %c0_3 = arith.constant 0 : index
    %c0_4 = arith.constant 0 : index
    %14 = vector.load %arg2[%c0_3, %c0_4] : memref<16x16xf32, #tpu.memory_space<vmem>>, vector<16x16xf32>
    %cst_5 = arith.constant dense<0.000000e+00> : vector<8x16xf32>
    %15 = tpu.matmul %13, %14, %cst_5 {dimension_numbers = #tpu.dot_dimension_numbers<[1], [0], [0], [1], [0, 0, 1, 1], [], []>} : vector<8x16xf32>, vector<16x16xf32>, vector<8x16xf32> -> vector<8x16xf32>
    %c0_6 = arith.constant 0 : index
    %c0_7 = arith.constant 0 : index
    %16 = vector.load %arg3[%c0_6, %c0_7] : memref<8x1xi32, #tpu.memory_space<vmem>>, vector<8x1xi32>
    %17 = tpu.iota {dimensions = array<i32: 1>} : vector<8x16xi32>
    %18 = vector.broadcast %16 : vector<8x1xi32> to vector<8x16xi32>
    %19 = arith.cmpi eq, %17, %18 : vector<8x16xi32>
    %cst_8 = arith.constant 0.000000e+00 : f32
    %20 = vector.broadcast %cst_8 : f32 to vector<8x16xf32>
    %21 = arith.select %19, %15, %20 : vector<8x16xi1>, vector<8x16xf32>
    %cst_9 = arith.constant dense<0.000000e+00> : vector<8xf32>
    %22 = vector.multi_reduction <add>, %21, %cst_9 [1] : vector<8x16xf32> to vector<8xf32>
    %23 = vector.shape_cast %22 : vector<8xf32> to vector<8x1xf32>
    %cst_10 = arith.constant 1.000000e-07 : f32
    %24 = vector.broadcast %cst_10 : f32 to vector<8x1xf32>
    %25 = arith.maximumf %23, %24 : vector<8x1xf32>
    %26 = math.log %25 : vector<8x1xf32>
    %c8_i32 = arith.constant 8 : i32
    %27 = arith.muli %arg0, %c8_i32 : i32
    %28 = tpu.iota {dimensions = array<i32: 0>} : vector<8x1xi32>
    %29 = vector.broadcast %27 : i32 to vector<8x1xi32>
    %30 = arith.addi %29, %28 : vector<8x1xi32>
    %c19_i32 = arith.constant 19 : i32
    %31 = vector.broadcast %c19_i32 : i32 to vector<8x1xi32>
    %32 = arith.cmpi slt, %30, %31 : vector<8x1xi32>
    %cst_11 = arith.constant 0.000000e+00 : f32
    %33 = vector.broadcast %cst_11 : f32 to vector<8x1xf32>
    %34 = arith.select %32, %26, %33 : vector<8x1xi1>, vector<8x1xf32>
    %c0_12 = arith.constant 0 : index
    %c0_13 = arith.constant 0 : index
    %35 = vector.load %arg5[%c0_12, %c0_13] : memref<1x1xf32, #tpu.memory_space<vmem>>, vector<1x1xf32>
    %cst_14 = arith.constant dense<0.000000e+00> : vector<1xf32>
    %36 = vector.multi_reduction <add>, %34, %cst_14 [0] : vector<8x1xf32> to vector<1xf32>
    %37 = vector.shape_cast %36 : vector<1xf32> to vector<1x1xf32>
    %38 = arith.addf %35, %37 : vector<1x1xf32>
    %c0_15 = arith.constant 0 : index
    %c0_16 = arith.constant 0 : index
    %39 = vector.load %arg5[%c0_15, %c0_16] : memref<1x1xf32, #tpu.memory_space<vmem>>, vector<1x1xf32>
    tpu.vector_store %arg5[%c0_15, %c0_16], %38 {strides = array<i32>} : memref<1x1xf32, #tpu.memory_space<vmem>>, vector<1x1xf32>,
    %c0_17 = arith.constant 0 : index
    %c0_18 = arith.constant 0 : index
    %40 = vector.load %arg5[%c0_17, %c0_18] : memref<1x1xf32, #tpu.memory_space<vmem>>, vector<1x1xf32>
    %cst_19 = arith.constant 0.000000e+00 : f32
    %41 = vector.broadcast %cst_19 : f32 to vector<1x1xf32>
    %42 = arith.subf %41, %40 : vector<1x1xf32>
    %c0_20 = arith.constant 0 : index
    %c0_21 = arith.constant 0 : index
    %43 = vector.load %arg4[%c0_20, %c0_21] : memref<1x1xf32, #tpu.memory_space<vmem>>, vector<1x1xf32>
    tpu.vector_store %arg4[%c0_20, %c0_21], %42 {strides = array<i32>} : memref<1x1xf32, #tpu.memory_space<vmem>>, vector<1x1xf32>,
    return
  }
  func.func @transform_0(%arg0: i32) -> (i32, i32) {
    %c0_i32 = arith.constant 0 : i32
    %c0_i32_0 = arith.constant 0 : i32
    return %arg0, %c0_i32 : i32, i32
  }
  func.func @transform_1(%arg0: i32) -> (i32, i32) {
    %c0_i32 = arith.constant 0 : i32
    %c0_i32_0 = arith.constant 0 : i32
    %c0_i32_1 = arith.constant 0 : i32
    return %c0_i32, %c0_i32_0 : i32, i32
  }
  func.func @transform_2(%arg0: i32) -> (i32, i32) {
    %c0_i32 = arith.constant 0 : i32
    %c0_i32_0 = arith.constant 0 : i32
    return %arg0, %c0_i32 : i32, i32
  }
  func.func @transform_3(%arg0: i32) -> (i32, i32) {
    %c0_i32 = arith.constant 0 : i32
    %c0_i32_0 = arith.constant 0 : i32
    %c0_i32_1 = arith.constant 0 : i32
    return %c0_i32, %c0_i32_0 : i32, i32
  }
}

</mosaic_0001>

<llo_original>
// kernel: tpu_custom_call.1
$region0: #{tpu_custom_call.1}
  #allocation0 [shape = 'u32[]', space=smem, size = 0x4, offset = 0x4, fixed_abs, tag = 'smem constant byte address 0x4 - core index']
  #allocation1 [shape = 'u32[144,128]{1,0:T(1,128)}', space=vmem, size = 0x12000, scoped, tag = 'internal scratch']
  #allocation2 [shape = 'f32[1,1]{1,0:T(1,128)}', space=vmem, size = 0x200, scoped, tag = 'scratch operand']
  %s0 = inlined_call_operand.vmem [shape: f32[24,16], index: 0, kind: input, shape index: {}]
  %s1 = inlined_call_operand.vmem [shape: f32[16,16], index: 1, kind: input, shape index: {}]
  %s2 = inlined_call_operand.vmem [shape: s32[24,1], index: 2, kind: input, shape index: {}]
  %s3 = inlined_call_operand.hbm [shape: f32[1,1], index: 3, kind: output, shape index: {}]
  %s4 = sld [smem:[#allocation0]]
  $region49: #{tpu_custom_call.1} parent=0
    _
  %s6 = ssub.s32 1, %s4
  %s7 = scalar_select 0, %s6, %s4
  $region1: #{tpu_custom_call.1} parent=0
    #allocation3 [shape = 'u8[512]{0}', space=vmem, size = 0x400, scoped, tag = 'output window, operand 0, single buffered']
    #allocation4 [shape = 's32[2]{0}', space=sflag, size = 0x8, scoped, tag = 'scoped memory for tpu_custom_call.1']
    %8 = vsyncpa [#allocation4], 0
    loop: start=0, step=1, limit=5
    $region2: #{tpu_custom_call.1} parent=1 // loop_pre_header
      _
    $region3: #{tpu_custom_call.1} parent=1 // loop_header
      %s10 = sphi 0, %s14
      %p11 = scmp.ge.s32.totalorder %s10, 5
      %s20 = sphi 0, %s22
      %s23 = sphi 0, %s20
      %s24 = sphi 0, %s23
      %s40 = sphi 0, %s24
      %s44 = sphi 0, %s44
      %s46 = sphi 0, %s44
      %s47 = sphi 0, %s46
      %s61 = sphi 0, %s47
      %s67 = sphi 0, %s69
      %s70 = sphi 0, %s67
      %s71 = sphi 0, %s70
      %s87 = sphi 0, %s71
      %s91 = sphi 0, %s91
      %s93 = sphi 0, %s91
      %s94 = sphi 0, %s93
      %s108 = sphi 0, %s94
    $region4: #{tpu_custom_call.1} parent=1 // loop_header_branch
      %13 = sbr.rel (%p11) target = $region8
    $region5: #{tpu_custom_call.1} parent=1 // loop_body
      %s15 = ssub.s32 %s10, 1
      %s16 = ssub.s32 %s10, 2
      %s17 = sadd.s32 %s10, 1
      %s18 = ssub.s32 %s10, %s17
      %p19 = scmp.eq.s32.totalorder %s18, 0
      %s21 = sadd.s32 %s20, 1
      %s22 = scalar_select %p19, %s20, %s21
      %p25 = pneg %p19
      %p26 = scmp.eq.s32.totalorder %s10, 2
      %p27 = por %p25, %p26
      %p28 = scmp.ne.s32.totalorder %s20, %s23
      %p29 = scmp.eq.s32.totalorder %s10, 0
      %p30 = por %p28, %p29
      %p31 = scmp.ne.s32.totalorder %s20, %s23
      %p32 = scmp.eq.s32.totalorder %s15, 2
      %p33 = por %p31, %p32
      %p34 = scmp.ne.s32.totalorder %s23, %s24
      %p35 = scmp.eq.s32.totalorder %s15, 0
      %p36 = por %p34, %p35
      %p37 = scmp.ne.s32.totalorder %s23, %s24
      %p38 = scmp.eq.s32.totalorder %s16, 2
      %p39 = por %p37, %p38
      %p41 = scmp.ne.s32.totalorder %s24, %s40
      %p42 = scmp.eq.s32.totalorder %s16, 0
      %p43 = por %p41, %p42
      %s45 = sadd.s32 %s44, 1
      %p48 = scmp.eq.s32.totalorder %s10, 2
      %p49 = scmp.ne.s32.totalorder %s44, %s46
      %p50 = scmp.eq.s32.totalorder %s10, 0
      %p51 = por %p49, %p50
      %p52 = scmp.ne.s32.totalorder %s44, %s46
      %p53 = scmp.eq.s32.totalorder %s15, 2
      %p54 = por %p52, %p53
      %p55 = scmp.ne.s32.totalorder %s46, %s47
      %p56 = scmp.eq.s32.totalorder %s15, 0
      %p57 = por %p55, %p56
      %p58 = scmp.ne.s32.totalorder %s46, %s47
      %p59 = scmp.eq.s32.totalorder %s16, 2
      %p60 = por %p58, %p59
      %p62 = scmp.ne.s32.totalorder %s47, %s61
      %p63 = scmp.eq.s32.totalorder %s16, 0
      %p64 = por %p62, %p63
      %s65 = ssub.s32 %s10, %s17
      %p66 = scmp.eq.s32.totalorder %s65, 0
      %s68 = sadd.s32 %s67, 1
      %s69 = scalar_select %p66, %s67, %s68
      %p72 = pneg %p66
      %p73 = scmp.eq.s32.totalorder %s10, 2
      %p74 = por %p72, %p73
      %p75 = scmp.ne.s32.totalorder %s67, %s70
      %p76 = scmp.eq.s32.totalorder %s10, 0
      %p77 = por %p75, %p76
      %p78 = scmp.ne.s32.totalorder %s67, %s70
      %p79 = scmp.eq.s32.totalorder %s15, 2
      %p80 = por %p78, %p79
      %p81 = scmp.ne.s32.totalorder %s70, %s71
      %p82 = scmp.eq.s32.totalorder %s15, 0
      %p83 = por %p81, %p82
      %p84 = scmp.ne.s32.totalorder %s70, %s71
      %p85 = scmp.eq.s32.totalorder %s16, 2
      %p86 = por %p84, %p85
      %p88 = scmp.ne.s32.totalorder %s71, %s87
      %p89 = scmp.eq.s32.totalorder %s16, 0
      %p90 = por %p88, %p89
      %s92 = sadd.s32 %s91, 1
      %p95 = scmp.eq.s32.totalorder %s10, 2
      %p96 = scmp.ne.s32.totalorder %s91, %s93
      %p97 = scmp.eq.s32.totalorder %s10, 0
      %p98 = por %p96, %p97
      %p99 = scmp.ne.s32.totalorder %s91, %s93
      %p100 = scmp.eq.s32.totalorder %s15, 2
      %p101 = por %p99, %p100
      %p102 = scmp.ne.s32.totalorder %s93, %s94
      %p103 = scmp.eq.s32.totalorder %s15, 0
      %p104 = por %p102, %p103
      %p105 = scmp.ne.s32.totalorder %s93, %s94
      %p106 = scmp.eq.s32.totalorder %s16, 2
      %p107 = por %p105, %p106
      %p109 = scmp.ne.s32.totalorder %s94, %s108
      %p110 = scmp.eq.s32.totalorder %s16, 0
      %p111 = por %p109, %p110
      %p112 = scmp.le.s32.totalorder 1, %s10
      %p113 = scmp.lt.s32.totalorder %s10, 4
      %p114 = pnand %p112, %p113
      %p115 = pneg %p114
      // Predicated region
      $region9: #{tpu_custom_call.1} parent=5 // pred_check
        _
      $region10: #{tpu_custom_call.1} parent=5 // pred_check_branch
        %117 = sbr.rel (%p114) target = $region12
      $region11: #{tpu_custom_call.1} parent=5 // pred_region
        %s118 = ssub.s32 %s10, 1
        // Predicated region
        $region13: #{tpu_custom_call.1} parent=11 // pred_check
          %p119 = pneg %p57
        $region14: #{tpu_custom_call.1} parent=11 // pred_check_branch
          %121 = sbr.rel (%p119) target = $region16
        $region15: #{tpu_custom_call.1} parent=11 // pred_region
          _
        $region16: #{tpu_custom_call.1} parent=11 // pred_fallthru
          _
      $region12: #{tpu_custom_call.1} parent=5 // pred_fallthru
        _
      %p122 = scmp.lt.s32.totalorder %s10, 3
      // Predicated region
      $region17: #{tpu_custom_call.1} parent=5 // pred_check
        %p123 = pneg %p122
      $region18: #{tpu_custom_call.1} parent=5 // pred_check_branch
        %125 = sbr.rel (%p123) target = $region20
      $region19: #{tpu_custom_call.1} parent=5 // pred_region
        // Predicated region
        $region21: #{tpu_custom_call.1} parent=19 // pred_check
          %p126 = pneg %p30
        $region22: #{tpu_custom_call.1} parent=19 // pred_check_branch
          %128 = sbr.rel (%p126) target = $region24
        $region23: #{tpu_custom_call.1} parent=19 // pred_region
          %p129 = scmp.lt.s32.totalorder %s10, 2
          %s130 = scalar_select %p129, %s10, 2
          %s131 = smul.addr %s130, 8
          %s132 = scalar_lea.vmem %s0, %s131
        $region24: #{tpu_custom_call.1} parent=19 // pred_fallthru
          _
        // Predicated region
        $region25: #{tpu_custom_call.1} parent=19 // pred_check
          %p133 = pneg %p77
        $region26: #{tpu_custom_call.1} parent=19 // pred_check_branch
          %135 = sbr.rel (%p133) target = $region28
        $region27: #{tpu_custom_call.1} parent=19 // pred_region
          %p136 = scmp.lt.s32.totalorder %s10, 2
          %s137 = scalar_select %p136, %s10, 2
          %s138 = smul.addr %s137, 8
          %s139 = scalar_lea.vmem %s2, %s138
        $region28: #{tpu_custom_call.1} parent=19 // pred_fallthru
          _
      $region20: #{tpu_custom_call.1} parent=5 // pred_fallthru
        _
      %p140 = scmp.le.s32.totalorder 1, %s10
      %p141 = scmp.lt.s32.totalorder %s10, 4
      %p142 = pnand %p140, %p141
      %p143 = pneg %p142
      // Predicated region
      $region29: #{tpu_custom_call.1} parent=5 // pred_check
        _
      $region30: #{tpu_custom_call.1} parent=5 // pred_check_branch
        %145 = sbr.rel (%p142) target = $region32
      $region31: #{tpu_custom_call.1} parent=5 // pred_region
        %s146 = ssub.s32 %s10, 1
        %p147 = scmp.lt.s32.totalorder %s15, 2
        %s148 = scalar_select %p147, %s15, 2
        %s149 = smul.addr %s148, 8
        %s150 = scalar_lea.vmem %s0, %s149
        %p151 = pneg %p36
        %p152 = pneg %p33
        %p153 = pneg %p57
        %p154 = pneg %p54
        %p155 = scmp.lt.s32.totalorder %s15, 2
        %s156 = scalar_select %p155, %s15, 2
        %s157 = smul.addr %s156, 8
        %s158 = scalar_lea.vmem %s2, %s157
        %p159 = pneg %p83
        %p160 = pneg %p80
        %p161 = pneg %p104
        %p162 = pneg %p101
        %p163 = scmp.lt.s32.totalorder %s15, 2
        %s164 = scalar_select %p163, %s15, 2
        %s165 = smul.addr %s164, 8
        %s166 = scalar_lea.vmem %s0, %s165
        %p167 = scmp.lt.s32.totalorder %s15, 2
        %s168 = scalar_select %p167, %s15, 2
        %s169 = smul.addr %s168, 8
        %s170 = scalar_lea.vmem %s2, %s169
        %p171 = scmp.eq.s32.totalorder %s15, 0
        // Predicated region
        $region33: #{tpu_custom_call.1} parent=31 // pred_check
          %p172 = pneg %p171
        $region34: #{tpu_custom_call.1} parent=31 // pred_check_branch
          %174 = sbr.rel (%p172) target = $region36
        $region35: #{tpu_custom_call.1} parent=31 // pred_region
          %vm175 = vcmask 0
          %176 = vst.msk [vmem:[#allocation2] sm:$0x1] %vm175, 0.0
        $region36: #{tpu_custom_call.1} parent=31 // pred_fallthru
          _
        %v177 = vld [vmem:[%s166] sm:$0xff]
        %vm178 = vcmask 130048
        %v179 = vsel %vm178, %v177, -inf
        %180 = vmax.xlane.f32.xlu0 %v179
        %v181 = vpop.xlane.xlu0 %180
        %v182 = vsub.f32 %v177, %v181
        %v183 = vmul.f32 %v182, 1.442695
        %v184 = vpow.pop %v183
        %v185 = vsel %vm178, %v184, 0.0
        %186 = vadd.xlane.f32.xlu0 %v185
        %v187 = vpop.xlane.xlu0 %186
        %v188 = vrcp.pop %v187
        %v189 = vmul.f32 %v184, %v188
        %v190 = vld [vmem:[%s1] sm:$0xff]
        %v191 = vld [vmem:[%s1 + $0x8] sm:$0xff]
        %v193 = vsel %vm178, %v189, 0
        %195 = vmatprep.subr.mxu0 0.0
        %196 = vmatpush1.msra.mxu0 %v190
        %197 = vmatprep.subr.mxu0 0.0
        %198 = vmatpush1.msra.mxu0 %v191
        %199 = vmatprep.subr.mxu0 0.0
        %200 = vmatpush1.msra.mxu0 0.0
        %201 = vmatprep.subr.mxu0 0.0
        %202 = vmatpush1.msra.mxu0 0.0
        %203 = vmatprep.subr.mxu0 0.0
        %204 = vmatpush1.msra.mxu0 0.0
        %205 = vmatprep.subr.mxu0 0.0
        %206 = vmatpush1.msra.mxu0 0.0
        %207 = vmatprep.subr.mxu0 0.0
        %208 = vmatpush1.msra.mxu0 0.0
        %209 = vmatprep.subr.mxu0 0.0
        %210 = vmatpush1.msra.mxu0 0.0
        %211 = vmatprep.subr.mxu0 0.0
        %212 = vmatpush1.msra.mxu0 0.0
        %213 = vmatprep.subr.mxu0 0.0
        %214 = vmatpush1.msra.mxu0 0.0
        %215 = vmatprep.subr.mxu0 0.0
        %216 = vmatpush1.msra.mxu0 0.0
        %217 = vmatprep.subr.mxu0 0.0
        %218 = vmatpush1.msra.mxu0 0.0
        %219 = vmatprep.subr.mxu0 0.0
        %220 = vmatpush1.msra.mxu0 0.0
        %221 = vmatprep.subr.mxu0 0.0
        %222 = vmatpush1.msra.mxu0 0.0
        %223 = vmatprep.subr.mxu0 0.0
        %224 = vmatpush1.msra.mxu0 0.0
        %225 = vmatprep.subr.mxu0 0.0
        %226 = vmatpush1.msra.mxu0 0.0
        %227 = vmatprep.subr.mxu0 0.0
        %228 = vmatpush1.msra.mxu0 0.0
        %229 = vmatprep.subr.mxu0 0.0
        %230 = vmatpush1.msra.mxu0 0.0
        %231 = vmatprep.subr.mxu0 0.0
        %232 = vmatpush1.msra.mxu0 0.0
        %233 = vmatprep.subr.mxu0 0.0
        %234 = vmatpush1.msra.mxu0 0.0
        %235 = vmatprep.subr.mxu0 0.0
        %236 = vmatpush1.msra.mxu0 0.0
        %237 = vmatprep.subr.mxu0 0.0
        %238 = vmatpush1.msra.mxu0 0.0
        %239 = vmatprep.subr.mxu0 0.0
        %240 = vmatpush1.msra.mxu0 0.0
        %241 = vmatprep.subr.mxu0 0.0
        %242 = vmatpush1.msra.mxu0 0.0
        %243 = vmatprep.subr.mxu0 0.0
        %244 = vmatpush1.msra.mxu0 0.0
        %245 = vmatprep.subr.mxu0 0.0
        %246 = vmatpush1.msra.mxu0 0.0
        %247 = vmatprep.subr.mxu0 0.0
        %248 = vmatpush1.msra.mxu0 0.0
        %249 = vmatprep.subr.mxu0 0.0
        %250 = vmatpush1.msra.mxu0 0.0
        %251 = vmatprep.subr.mxu0 0.0
        %252 = vmatpush1.msra.mxu0 0.0
        %253 = vmatprep.subr.mxu0 0.0
        %254 = vmatpush1.msra.mxu0 0.0
        %255 = vmatprep.subr.mxu0 0.0
        %256 = vmatpush1.msra.mxu0 0.0
        %257 = vmatprep.subr.mxu0 0.0
        %258 = vmatpush1.msra.mxu0 0.0
        %259 = vmatprep.mubr.f32.mxu0 0.0
        %260 = vmatmul.mubr.f32.gmra.mrb[0].mxu0 %v193
        %v261 = vpop.f32.mrb[0].mxu0
        %v262 = vadd.f32 0.0, %v261
        %v263 = vpop.f32.mrb[0].mxu0
        %264 = vdwg.mxu0
        %v265 = vld [vmem:[%s170] sm:$0xff]
        %v266 = vlaneseq
        %v267 = vand.u32 %v266, 127
        %268 = vset.pattern.permute.xlu0 0
        %269 = vperm.xlu0 %268, %v265
        %v270 = vpop.permute.xlu0 %269
        %vm271 = vcmp.eq.s32.totalorder %v267, %v270
        %v272 = vsel %vm271, %v262, 0.0
        %v273 = vsel %vm178, %v272, 0.0
        %274 = vadd.xlane.f32.xlu0 %v273
        %v275 = vpop.xlane.xlu0 %274
        %v276 = vmax.f32 %v275, 1e-07
        %v277 = vlog2.pop %v276
        %v278 = vmul.f32 %v277, 0.6931472
        %s279 = smul.u32 %s15, 8
        %v280 = vlaneseq
        %v281 = vshrl.u32 %v280, 7
        %v282 = vstv %s279
        %v283 = vadd.s32 %v282, %v281
        %vm284 = vcmp.lt.s32.totalorder %v283, 19
        %v285 = vsel %vm284, %v278, 0.0
        %v286 = vld [vmem:[#allocation2] sm:$0x1]
        %v287 = vrot.slane %v285, 4
        %v288 = vadd.f32 %v285, %v287
        %v289 = vrot.slane %v288, 2
        %v290 = vadd.f32 %v288, %v289
        %v291 = vrot.slane %v290, 1
        %v292 = vadd.f32 %v290, %v291
        %v293 = vadd.f32 %v286, %v292
        %vm294 = vcmask 0
        %295 = vst.msk [vmem:[#allocation2] sm:$0x1] %vm294, %v293
        %v296 = vld [vmem:[#allocation2] sm:$0x1]
        %v297 = vsub.f32 0.0, %v296
        %298 = vst.msk [vmem:[#allocation3] sm:$0x1] %vm294, %v297
        // Predicated region
        $region37: #{tpu_custom_call.1} parent=31 // pred_check
          %p299 = pneg %p101
        $region38: #{tpu_custom_call.1} parent=31 // pred_check_branch
          %301 = sbr.rel (%p299) target = $region40
        $region39: #{tpu_custom_call.1} parent=31 // pred_region
          %s303 = ssub.s32 16, 16
          %304 = vsyncadd [#allocation4], %s303
          %s306 = sshll.u32 [#allocation3], 4
          %s307 = int_to_ptr.vmem [resolvable:$true] %s306
          %309 = dma.vmem_to_hbm [thread:$0]  %s307, 16, %s3, [#allocation4]
        $region40: #{tpu_custom_call.1} parent=31 // pred_fallthru
          _
        // Predicated region
        $region41: #{tpu_custom_call.1} parent=31 // pred_check
          %p310 = pneg %p101
        $region42: #{tpu_custom_call.1} parent=31 // pred_check_branch
          %312 = sbr.rel (%p310) target = $region44
        $region43: #{tpu_custom_call.1} parent=31 // pred_region
          %313 = dma.done [#allocation4], 16
        $region44: #{tpu_custom_call.1} parent=31 // pred_fallthru
          _
      $region32: #{tpu_custom_call.1} parent=5 // pred_fallthru
        _
      %p314 = scmp.le.s32.totalorder 2, %s10
      // Predicated region
      $region45: #{tpu_custom_call.1} parent=5 // pred_check
        %p315 = pneg %p314
      $region46: #{tpu_custom_call.1} parent=5 // pred_check_branch
        %317 = sbr.rel (%p315) target = $region48
      $region47: #{tpu_custom_call.1} parent=5 // pred_region
        %s318 = ssub.s32 %s10, 2
      $region48: #{tpu_custom_call.1} parent=5 // pred_fallthru
        _
    $region6: #{tpu_custom_call.1} parent=1 // loop_footer
      %s14 = sadd.s32 1, %s10
    $region7: #{tpu_custom_call.1} parent=1 // loop_footer_branch
      %9 = sbr.rel target = $region3
    $region8: #{tpu_custom_call.1} parent=1 // loop_exit
      _
    %319 = vsyncpa [#allocation4], 1
    %s320 = scalar_lea.sflag [#allocation4], 1
    %321 = vsyncpa %s320, 1

</llo_original>
